<compile_context>
chip_gen: v6e
topology: v6e:2x2x1
jax: 0.10.0
libtpu: 0.0.40
codegen_flags: <defaults>
</compile_context>

<pallas_src>
import functools

import jax
import jax.numpy as jnp
from jax.experimental import pallas as pl
from jax.experimental.pallas import tpu as pltpu

LANE = 128
SUBLANE = 8


def _round_up(n: int, m: int) -> int:
    return ((n + m - 1) // m) * m


def _mlp_kernel(x_ref, w1_ref, b1_ref, w23_ref, b23_ref, o_ref):
    """o = sin(x @ W1 + b1) @ W23 + b23   (all blocks resident in VMEM)."""
    x = x_ref[...]                      # (TB, D_in)
    w1 = w1_ref[...]                    # (D_in, H)
    d_in = x_ref.shape[1]

    if d_in <= 8:
        # Tiny contraction dim: a (TB,D_in)x(D_in,H) matmul would waste a full
        # MXU pass; do it as D_in broadcast multiply-accumulates on the VPU.
        h = b1_ref[...] + x[:, 0:1] * w1[0:1, :]
        for k in range(1, d_in):
            h = h + x[:, k : k + 1] * w1[k : k + 1, :]
    else:
        h = jnp.dot(x, w1, preferred_element_type=jnp.float32) + b1_ref[...]

    h = jnp.sin(h)                      # EUP transcendental (own bundle slot)

    # Single fused H -> D_out_padded matmul (replaces linear2 + linear3).
    y = jnp.dot(h, w23_ref[...], preferred_element_type=jnp.float32) + b23_ref[...]
    o_ref[...] = y.astype(o_ref.dtype)  # lane-dense (TB, 128k) unmasked store


def prepare_params(w1, b1, w2, b2, w3, b3):
    """One-time (per weight update) prep: fuse linear2/linear3 and pad lanes.

    w*: (in, out) f32 (already transposed vs. torch's (out, in) layout).
    Returns (w1, b1_row, w23_padded, b23_padded_row, d_out).
    """
    d_out = w3.shape[1]
    n_pad = _round_up(max(d_out, 1), LANE)

    w23 = jnp.dot(w2, w3, preferred_element_type=jnp.float32)       # (H, D_out)
    b23 = jnp.dot(b2, w3, preferred_element_type=jnp.float32) + b3  # (D_out,)

    w23p = jnp.zeros((w1.shape[1], n_pad), jnp.float32).at[:, :d_out].set(w23)
    b23p = jnp.zeros((1, n_pad), jnp.float32).at[:, :d_out].set(b23)
    return w1, b1.reshape(1, -1), w23p, b23p, d_out


def _choose_batch_tiling(B: int, tb: int):
    """Balanced batch tiles: TB (multiple of 8, <= tb) and padded batch size."""
    b8 = _round_up(B, SUBLANE)
    if b8 <= tb:
        return b8, b8                       # single grid step
    nt = pl.cdiv(b8, tb)                    # number of grid steps
    tb_bal = _round_up(pl.cdiv(b8, nt), SUBLANE)
    return tb_bal, tb_bal * nt


@functools.partial(jax.jit, static_argnames=("d_out", "tb"))
def _forward_prepared(x, w1, b1r, w23p, b23p, *, d_out, tb=512):
    B, D_in = x.shape
    H = w1.shape[1]
    n_pad = w23p.shape[1]

    TB, B_pad = _choose_batch_tiling(B, tb)
    if B_pad != B:
        x = jnp.pad(x, ((0, B_pad - B), (0, 0)))
    grid = (B_pad // TB,)

    out = pl.pallas_call(
        _mlp_kernel,
        out_shape=jax.ShapeDtypeStruct((B_pad, n_pad), jnp.float32),
        grid=grid,
        in_specs=[
            pl.BlockSpec((TB, D_in), lambda i: (i, 0)),     # x: tiled over batch
            pl.BlockSpec((D_in, H), lambda i: (0, 0)),      # W1: replicated
            pl.BlockSpec((1, H), lambda i: (0, 0)),         # b1 row
            pl.BlockSpec((H, n_pad), lambda i: (0, 0)),     # fused W23 (lane-padded)
            pl.BlockSpec((1, n_pad), lambda i: (0, 0)),     # fused b23 row
        ],
        out_specs=pl.BlockSpec((TB, n_pad), lambda i: (i, 0)),
        compiler_params=pltpu.CompilerParams(
            dimension_semantics=("parallel",),              # shard batch across TCs (v7x)
        ),
    )(x, w1, b1r, w23p, b23p)

    # Cheap XLA slice outside the kernel: drop batch padding + lane padding.
    return out[:B, :d_out]


def model_forward(x, w1, b1, w2, b2, w3, b3, *, tb=512):
    """x: (B, D_in) f32. Weights (in, out), biases (out,). Returns (B, D_out) f32."""
    w1p, b1r, w23p, b23p, d_out = prepare_params(w1, b1, w2, b2, w3, b3)
    return _forward_prepared(x, w1p, b1r, w23p, b23p, d_out=d_out, tb=tb)


def model_forward_ref(x, w1, b1, w2, b2, w3, b3):
    h = jnp.sin(x @ w1 + b1)
    return (h @ w2 + b2) @ w3 + b3


def init_params(key, D_in, H, D_out):
    """Deterministic init mimicking torch.nn.Linear default (uniform +- 1/sqrt(fan_in))."""
    ks = jax.random.split(key, 6)

    def lin(kw, kb, fan_in, fan_out):
        bound = 1.0 / jnp.sqrt(jnp.float32(fan_in))
        w = jax.random.uniform(kw, (fan_in, fan_out), jnp.float32, -bound, bound)
        b = jax.random.uniform(kb, (fan_out,), jnp.float32, -bound, bound)
        return w, b

    w1, b1 = lin(ks[0], ks[1], D_in, H)
    w2, b2 = lin(ks[2], ks[3], H, 2)
    w3, b3 = lin(ks[4], ks[5], 2, D_out)
    return w1, b1, w2, b2, w3, b3


if __name__ == "__main__":
    key = jax.random.PRNGKey(0)
    kx, kx2, kx3, kp = jax.random.split(key, 4)

    # Small shapes consistent with the module: x ~ (batch, D_in).
    B, D_in, H, D_out = 8, 4, 32, 3
    params = init_params(kp, D_in, H, D_out)

    # Case 1: tiny batch (single grid step).
    x = jax.random.normal(kx, (B, D_in), jnp.float32)
    out = jax.block_until_ready(model_forward(x, *params))
    ref = model_forward_ref(x, *params)
    assert out.shape == (B, D_out)
    assert jnp.allclose(out, ref, atol=1e-5, rtol=1e-5), "mismatch vs JAX reference (small batch)"

    # Case 2: larger, non-aligned batch exercises balanced batch tiles + padding.
    B2 = 1037
    x2 = jax.random.normal(kx2, (B2, D_in), jnp.float32)
    out2 = jax.block_until_ready(model_forward(x2, *params))
    ref2 = model_forward_ref(x2, *params)
    assert out2.shape == (B2, D_out)
    assert jnp.allclose(out2, ref2, atol=1e-5, rtol=1e-5), "mismatch vs JAX reference (tiled batch)"

    # Case 3: batch exactly one tile multiple (no-padding fast path).
    B3 = 512
    x3 = jax.random.normal(kx3, (B3, D_in), jnp.float32)
    out3 = jax.block_until_ready(model_forward(x3, *params))
    ref3 = model_forward_ref(x3, *params)
    assert out3.shape == (B3, D_out)
    assert jnp.allclose(out3, ref3, atol=1e-5, rtol=1e-5), "mismatch vs JAX reference (aligned batch)"

    print("KERNEL_OK")
</pallas_src>

<mosaic_0001>
module attributes {stable_mosaic.version = 11 : i64} {
  func.func @_mlp_kernel(%arg0: i32, %arg1: memref<8x4xf32, #tpu.memory_space<vmem>>, %arg2: memref<4x32xf32, #tpu.memory_space<vmem>>, %arg3: memref<1x32xf32, #tpu.memory_space<vmem>>, %arg4: memref<32x128xf32, #tpu.memory_space<vmem>>, %arg5: memref<1x128xf32, #tpu.memory_space<vmem>>, %arg6: memref<8x128xf32, #tpu.memory_space<vmem>>) attributes {dimension_semantics = [#tpu.dimension_semantics<parallel>], iteration_bounds = array<i64: 1>, scalar_prefetch = 0 : i64, scratch_operands = 0 : i64, tpu.core_type = #tpu.core_type<tc>, window_params = [{transform_indices = @transform_0, window_bounds = array<i64: 8, 4>}, {pipeline_mode = #tpu.pipeline_mode<synchronous>, transform_indices = @transform_1, window_bounds = array<i64: 4, 32>}, {pipeline_mode = #tpu.pipeline_mode<synchronous>, transform_indices = @transform_2, window_bounds = array<i64: 1, 32>}, {pipeline_mode = #tpu.pipeline_mode<synchronous>, transform_indices = @transform_3, window_bounds = array<i64: 32, 128>}, {pipeline_mode = #tpu.pipeline_mode<synchronous>, transform_indices = @transform_4, window_bounds = array<i64: 1, 128>}, {transform_indices = @transform_5, window_bounds = array<i64: 8, 128>}]} {
    %c0 = arith.constant 0 : index
    %c0_0 = arith.constant 0 : index
    %0 = vector.load %arg1[%c0, %c0_0] : memref<8x4xf32, #tpu.memory_space<vmem>>, vector<8x4xf32>
    %c0_1 = arith.constant 0 : index
    %c0_2 = arith.constant 0 : index
    %1 = vector.load %arg2[%c0_1, %c0_2] : memref<4x32xf32, #tpu.memory_space<vmem>>, vector<4x32xf32>
    %c0_3 = arith.constant 0 : index
    %c0_4 = arith.constant 0 : index
    %2 = vector.load %arg3[%c0_3, %c0_4] : memref<1x32xf32, #tpu.memory_space<vmem>>, vector<1x32xf32>
    %3 = vector.extract_strided_slice %0 {offsets = [0, 0], sizes = [8, 1], strides = [1, 1]} : vector<8x4xf32> to vector<8x1xf32>
    %4 = vector.extract_strided_slice %1 {offsets = [0, 0], sizes = [1, 32], strides = [1, 1]} : vector<4x32xf32> to vector<1x32xf32>
    %5 = vector.broadcast %3 : vector<8x1xf32> to vector<8x32xf32>
    %6 = vector.broadcast %4 : vector<1x32xf32> to vector<8x32xf32>
    %7 = arith.mulf %5, %6 : vector<8x32xf32>
    %8 = vector.broadcast %2 : vector<1x32xf32> to vector<8x32xf32>
    %9 = arith.addf %8, %7 : vector<8x32xf32>
    %10 = vector.extract_strided_slice %0 {offsets = [0, 1], sizes = [8, 1], strides = [1, 1]} : vector<8x4xf32> to vector<8x1xf32>
    %11 = vector.extract_strided_slice %1 {offsets = [1, 0], sizes = [1, 32], strides = [1, 1]} : vector<4x32xf32> to vector<1x32xf32>
    %12 = vector.broadcast %10 : vector<8x1xf32> to vector<8x32xf32>
    %13 = vector.broadcast %11 : vector<1x32xf32> to vector<8x32xf32>
    %14 = arith.mulf %12, %13 : vector<8x32xf32>
    %15 = arith.addf %9, %14 : vector<8x32xf32>
    %16 = vector.extract_strided_slice %0 {offsets = [0, 2], sizes = [8, 1], strides = [1, 1]} : vector<8x4xf32> to vector<8x1xf32>
    %17 = vector.extract_strided_slice %1 {offsets = [2, 0], sizes = [1, 32], strides = [1, 1]} : vector<4x32xf32> to vector<1x32xf32>
    %18 = vector.broadcast %16 : vector<8x1xf32> to vector<8x32xf32>
    %19 = vector.broadcast %17 : vector<1x32xf32> to vector<8x32xf32>
    %20 = arith.mulf %18, %19 : vector<8x32xf32>
    %21 = arith.addf %15, %20 : vector<8x32xf32>
    %22 = vector.extract_strided_slice %0 {offsets = [0, 3], sizes = [8, 1], strides = [1, 1]} : vector<8x4xf32> to vector<8x1xf32>
    %23 = vector.extract_strided_slice %1 {offsets = [3, 0], sizes = [1, 32], strides = [1, 1]} : vector<4x32xf32> to vector<1x32xf32>
    %24 = vector.broadcast %22 : vector<8x1xf32> to vector<8x32xf32>
    %25 = vector.broadcast %23 : vector<1x32xf32> to vector<8x32xf32>
    %26 = arith.mulf %24, %25 : vector<8x32xf32>
    %27 = arith.addf %21, %26 : vector<8x32xf32>
    %28 = math.sin %27 : vector<8x32xf32>
    %c0_5 = arith.constant 0 : index
    %c0_6 = arith.constant 0 : index
    %29 = vector.load %arg4[%c0_5, %c0_6] : memref<32x128xf32, #tpu.memory_space<vmem>>, vector<32x128xf32>
    %cst = arith.constant dense<0.000000e+00> : vector<8x128xf32>
    %30 = tpu.matmul %28, %29, %cst {dimension_numbers = #tpu.dot_dimension_numbers<[1], [0], [0], [1], [0, 0, 1, 1], [], []>} : vector<8x32xf32>, vector<32x128xf32>, vector<8x128xf32> -> vector<8x128xf32>
    %c0_7 = arith.constant 0 : index
    %c0_8 = arith.constant 0 : index
    %31 = vector.load %arg5[%c0_7, %c0_8] : memref<1x128xf32, #tpu.memory_space<vmem>>, vector<1x128xf32>
    %32 = vector.broadcast %31 : vector<1x128xf32> to vector<8x128xf32>
    %33 = arith.addf %30, %32 : vector<8x128xf32>
    %c0_9 = arith.constant 0 : index
    %c0_10 = arith.constant 0 : index
    %34 = vector.load %arg6[%c0_9, %c0_10] : memref<8x128xf32, #tpu.memory_space<vmem>>, vector<8x128xf32>
    tpu.vector_store %arg6[%c0_9, %c0_10], %33 {strides = array<i32>} : memref<8x128xf32, #tpu.memory_space<vmem>>, vector<8x128xf32>,
    return
  }
  func.func @transform_0(%arg0: i32) -> (i32, i32) {
    %c0_i32 = arith.constant 0 : i32
    %c0_i32_0 = arith.constant 0 : i32
    return %arg0, %c0_i32 : i32, i32
  }
  func.func @transform_1(%arg0: i32) -> (i32, i32) {
    %c0_i32 = arith.constant 0 : i32
    %c0_i32_0 = arith.constant 0 : i32
    %c0_i32_1 = arith.constant 0 : i32
    return %c0_i32, %c0_i32_0 : i32, i32
  }
  func.func @transform_2(%arg0: i32) -> (i32, i32) {
    %c0_i32 = arith.constant 0 : i32
    %c0_i32_0 = arith.constant 0 : i32
    %c0_i32_1 = arith.constant 0 : i32
    return %c0_i32, %c0_i32_0 : i32, i32
  }
  func.func @transform_3(%arg0: i32) -> (i32, i32) {
    %c0_i32 = arith.constant 0 : i32
    %c0_i32_0 = arith.constant 0 : i32
    %c0_i32_1 = arith.constant 0 : i32
    return %c0_i32, %c0_i32_0 : i32, i32
  }
  func.func @transform_4(%arg0: i32) -> (i32, i32) {
    %c0_i32 = arith.constant 0 : i32
    %c0_i32_0 = arith.constant 0 : i32
    %c0_i32_1 = arith.constant 0 : i32
    return %c0_i32, %c0_i32_0 : i32, i32
  }
  func.func @transform_5(%arg0: i32) -> (i32, i32) {
    %c0_i32 = arith.constant 0 : i32
    %c0_i32_0 = arith.constant 0 : i32
    return %arg0, %c0_i32 : i32, i32
  }
}

</mosaic_0001>

<llo_original>
// kernel: _forward_prepared.1
$region0: #{_forward_prepared.1}
  #allocation0 [shape = 'u32[]', space=smem, size = 0x4, offset = 0x4, fixed_abs, tag = 'smem constant byte address 0x4 - core index']
  #allocation1 [shape = 'u32[144,128]{1,0:T(1,128)}', space=vmem, size = 0x12000, scoped, tag = 'internal scratch']
  %s0 = inlined_call_operand.vmem [shape: f32[8,4], index: 0, kind: input, shape index: {}]
  %s1 = inlined_call_operand.vmem [shape: f32[4,32], index: 1, kind: input, shape index: {}]
  %s2 = inlined_call_operand.vmem [shape: f32[1,32], index: 2, kind: input, shape index: {}]
  %s3 = inlined_call_operand.hbm [shape: f32[32,128], index: 3, kind: input, shape index: {}]
  %s4 = inlined_call_operand.vmem [shape: f32[1,128], index: 4, kind: input, shape index: {}]
  %s5 = inlined_call_operand.vmem [shape: f32[8,128], index: 5, kind: output, shape index: {}]
  %s6 = sld [smem:[#allocation0]]
  $region34: #{_forward_prepared.1} parent=0
    _
  %s8 = ssub.s32 1, %s6
  %s9 = scalar_select 0, %s8, %s6
  $region1: #{_forward_prepared.1} parent=0
    #allocation2 [shape = 'u8[16384]{0}', space=vmem, size = 0x4000, scoped, tag = 'input window, operand 3, single buffered']
    #allocation3 [shape = 's32[1]{0}', space=sflag, size = 0x4, scoped, tag = 'scoped memory for _forward_prepared.1']
    %10 = vsyncpa [#allocation3], 0
    // Predicated region
    $region2: #{_forward_prepared.1} parent=1 // pred_check
      _
    $region3: #{_forward_prepared.1} parent=1 // pred_check_branch
      %12 = sbr.rel (0) target = $region5
    $region4: #{_forward_prepared.1} parent=1 // pred_region
      _
    $region5: #{_forward_prepared.1} parent=1 // pred_fallthru
      _
    // Predicated region
    $region6: #{_forward_prepared.1} parent=1 // pred_check
      _
    $region7: #{_forward_prepared.1} parent=1 // pred_check_branch
      %14 = sbr.rel (0) target = $region9
    $region8: #{_forward_prepared.1} parent=1 // pred_region
      _
    $region9: #{_forward_prepared.1} parent=1 // pred_fallthru
      _
    // Predicated region
    $region10: #{_forward_prepared.1} parent=1 // pred_check
      _
    $region11: #{_forward_prepared.1} parent=1 // pred_check_branch
      %16 = sbr.rel (0) target = $region13
    $region12: #{_forward_prepared.1} parent=1 // pred_region
      _
    $region13: #{_forward_prepared.1} parent=1 // pred_fallthru
      _
    // Predicated region
    $region14: #{_forward_prepared.1} parent=1 // pred_check
      _
    $region15: #{_forward_prepared.1} parent=1 // pred_check_branch
      %18 = sbr.rel (0) target = $region17
    $region16: #{_forward_prepared.1} parent=1 // pred_region
      %s20 = ssub.s32 512, 512
      %21 = vsyncadd [#allocation3], %s20
      %s22 = sshll.u32 [#allocation2], 4
      %s23 = int_to_ptr.vmem [resolvable:$true] %s22
      %28 = dma.hbm_to_vmem [thread:$0]  %s3, 512, %s23, [#allocation3], 128, 128, 8
    $region17: #{_forward_prepared.1} parent=1 // pred_fallthru
      _
    // Predicated region
    $region18: #{_forward_prepared.1} parent=1 // pred_check
      _
    $region19: #{_forward_prepared.1} parent=1 // pred_check_branch
      %30 = sbr.rel (0) target = $region21
    $region20: #{_forward_prepared.1} parent=1 // pred_region
      _
    $region21: #{_forward_prepared.1} parent=1 // pred_fallthru
      _
    // Predicated region
    $region22: #{_forward_prepared.1} parent=1 // pred_check
      _
    $region23: #{_forward_prepared.1} parent=1 // pred_check_branch
      %32 = sbr.rel (0) target = $region25
    $region24: #{_forward_prepared.1} parent=1 // pred_region
      %33 = dma.done [#allocation3], 512
    $region25: #{_forward_prepared.1} parent=1 // pred_fallthru
      _
    %v34 = vld [vmem:[%s0] sm:$0xff]
    %v35 = vld [vmem:[%s1] sm:$0xf]
    %v36 = vld [vmem:[%s2] sm:$0x1]
    %38 = vset.pattern.permute.xlu0 0
    %39 = vperm.xlu0 %38, %v34
    %v40 = vpop.permute.xlu0 %39
    %v42 = vlaneseq
    %v43 = vshrl.u32 %v42, 7
    %v44 = vsub.s32 0, %v43
    %v45 = vrot.slane %v35, %v44
    %v46 = vmul.f32 %v40, %v45
    %v48 = vlaneseq
    %v49 = vshrl.u32 %v48, 7
    %v50 = vsub.s32 0, %v49
    %v51 = vrot.slane %v36, %v50
    %v53 = vadd.f32 %v51, %v46
    %54 = vset.pattern.permute.xlu0 1
    %55 = vperm.xlu0 %54, %v34
    %v56 = vpop.permute.xlu0 %55
    %v58 = vlaneseq
    %v59 = vshrl.u32 %v58, 7
    %v60 = vsub.s32 1, %v59
    %v61 = vrot.slane %v35, %v60
    %v62 = vmul.f32 %v56, %v61
    %v63 = vadd.f32 %v53, %v62
    %64 = vset.pattern.permute.xlu0 2
    %65 = vperm.xlu0 %64, %v34
    %v66 = vpop.permute.xlu0 %65
    %v68 = vlaneseq
    %v69 = vshrl.u32 %v68, 7
    %v70 = vsub.s32 2, %v69
    %v71 = vrot.slane %v35, %v70
    %v72 = vmul.f32 %v66, %v71
    %v73 = vadd.f32 %v63, %v72
    %74 = vset.pattern.permute.xlu0 3
    %75 = vperm.xlu0 %74, %v34
    %v76 = vpop.permute.xlu0 %75
    %v78 = vlaneseq
    %v79 = vshrl.u32 %v78, 7
    %v80 = vsub.s32 3, %v79
    %v81 = vrot.slane %v35, %v80
    %v82 = vmul.f32 %v76, %v81
    %v83 = vadd.f32 %v73, %v82
    %v84 = vand.u32 2147483647, %v83
    %vm85 = vcmp.le.f32.partialorder %v84, 0.7853982
    %vm86 = vcmp.lt.s32.totalorder %v83, 0
    %v87 = vand.u32 %v83, 2139095040
    %v88 = vshrl.u32 %v87, 23
    %v89 = vsub.s32 %v88, 127
    %v90 = vand.u32 2147483647, %v83
    %v91 = vand.u32 %v90, 8388607
    %v92 = vor.u32 %v91, 8388608
    %v93 = vsub.s32 0, %v92
    %v94 = vadd.s32 %v89, 1
    %vm95 = vcmp.gt.s32.totalorder %v94, 0
    %v96 = vsel %vm95, %v94, 0
    %v97 = vshrl.u32 %v96, 5
    %v98 = vand.u32 %v96, 31
    %v99 = vsub.s32 32, %v98
    %v100 = vshrl.u32 683565275, %v99
    %v101 = vshll.u32 683565275, %v98
    %v102 = vshrl.u32 2475754826, %v99
    %v103 = vor.u32 %v101, %v102
    %v104 = vshll.u32 2475754826, %v98
    %v105 = vshrl.u32 2131351028, %v99
    %v106 = vor.u32 %v104, %v105
    %v107 = vshll.u32 2131351028, %v98
    %v108 = vshrl.u32 2102212464, %v99
    %v109 = vor.u32 %v107, %v108
    %v110 = vshll.u32 2102212464, %v98
    %v111 = vshrl.u32 920167782, %v99
    %v112 = vor.u32 %v110, %v111
    %v113 = vshll.u32 920167782, %v98
    %v114 = vshrl.u32 1326507024, %v99
    %v115 = vor.u32 %v113, %v114
    %vm116 = vcmp.lt.s32.totalorder %v97, 1
    %vm117 = vcmp.lt.s32.totalorder %v97, 2
    %vm118 = vcmp.lt.s32.totalorder %v97, 3
    %vm119 = vcmp.lt.s32.totalorder %v97, 4
    %v120 = vsel %vm116, %v100, %v103
    %v121 = vsel %vm119, %v109, 2102212464
    %v122 = vsel %vm118, %v106, %v121
    %v123 = vsel %vm117, %v120, %v122
    %v124 = vsel %vm116, %v103, %v106
    %v125 = vsel %vm119, %v112, 920167782
    %v126 = vsel %vm118, %v109, %v125
    %v127 = vsel %vm117, %v124, %v126
    %v128 = vsel %vm116, %v106, %v109
    %v129 = vsel %vm119, %v115, 1326507024
    %v130 = vsel %vm118, %v112, %v129
    %v131 = vsel %vm117, %v128, %v130
    %v132 = vshll.u32 %v92, 8
    %v133 = vmul.u32.u64.compose %v132, %v131
    %v134 = vextract.low.u32 %v133
    %v135 = vextract.high.u32 %v133
    %v136 = vmul.u32.u64.compose %v132, %v127
    %v137 = vextract.low.u32 %v136
    %v138 = vextract.high.u32 %v136
    %v139 = vmul.u32 %v132, %v123
    %v140 = vadd.s32 %v135, %v137
    %vm141 = vc.u32 %v135, %v137
    %v142 = vadd.s32 %v138, 1
    %v143 = vsel %vm141, %v142, %v138
    %v144 = vadd.s32 %v139, %v143
    %v145 = vadd.s32 %v144, 536870912
    %v146 = vshrl.u32 %v145, 30
    %v147 = vshll.u32 %v146, 30
    %v148 = vsub.s32 %v144, %v147
    %vm149 = vcmp.lt.s32.totalorder %v148, 0
    %v150 = vsub.s32 0, %v148
    %v151 = vsel %vm149, %v150, %v148
    %v152 = vclz %v151
    %v153 = vsub.s32 %v152, 2
    %vm154 = vcmp.gt.s32.totalorder 0, %v153
    %v155 = vsel %vm154, 0, %v153
    %v156 = vsub.s32 32, %v155
    %v157 = vshll.u32 %v148, %v155
    %v158 = vshrl.u32 %v140, %v156
    %v159 = vor.u32 %v157, %v158
    %v160 = vsub.s32 4294967266, %v155
    %v161 = vadd.s32 %v160, 127
    %v162 = vshll.u32 %v161, 23
    %v163 = vor.u32 4788187, %v162
    %v164 = vand.u32 2147483647, %v163
    %v166 = vcvt.s32.f32 %v159
    %v167 = vmul.f32 %v166, %v164
    %v168 = vxor.u32 %v167, 2147483648
    %v169 = vsel %vm86, %v168, %v167
    %v170 = vsub.s32 4, %v146
    %v171 = vsel %vm86, %v170, %v146
    %v172 = vsel %vm85, %v83, %v169
    %v173 = vsel %vm85, 0, %v171
    %v174 = vcosq.f32.pop %v172
    %v175 = vsinq.f32.pop %v172
    %vm176 = vweird.f32 %v83
    %v177 = vadd.s32 %v173, 3
    %v178 = vand.u32 %v177, 3
    %vm179 = vcmp.lt.s32.totalorder %v178, 2
    %vm180 = vcmp.eq.s32.totalorder %v178, 0
    %v181 = vxor.u32 %v175, 2147483648
    %v182 = vsel %vm180, %v174, %v181
    %vm183 = vcmp.eq.s32.totalorder %v178, 2
    %v184 = vxor.u32 %v174, 2147483648
    %v185 = vsel %vm183, %v184, %v175
    %v186 = vsel %vm179, %v182, %v185
    %v187 = vsel %vm176, nan, %v186
    %v188 = vld [vmem:[#allocation2] sm:$0xff]
    %v189 = vld [vmem:[#allocation2 + $0x8] sm:$0xff]
    %v190 = vld [vmem:[#allocation2 + $0x10] sm:$0xff]
    %v191 = vld [vmem:[#allocation2 + $0x18] sm:$0xff]
    %v192 = vld [vmem:[%s4] sm:$0x1]
    %v194 = vlaneseq
    %v195 = vshrl.u32 %v194, 7
    %v196 = vsub.s32 0, %v195
    %v197 = vrot.slane %v192, %v196
    %vm199 = vcmask 261120
    %v201 = vsel %vm199, %v187, 0
    %203 = vmatprep.subr.mxu0 0.0
    %204 = vmatpush1.msra.mxu0 0.0
    %205 = vmatprep.subr.mxu0 0.0
    %206 = vmatpush1.msra.mxu0 0.0
    %207 = vmatprep.subr.mxu0 0.0
    %208 = vmatpush1.msra.mxu0 0.0
    %209 = vmatprep.subr.mxu0 0.0
    %210 = vmatpush1.msra.mxu0 0.0
    %211 = vmatprep.subr.mxu0 0.0
    %212 = vmatpush1.msra.mxu0 0.0
    %213 = vmatprep.subr.mxu0 0.0
    %214 = vmatpush1.msra.mxu0 0.0
    %215 = vmatprep.subr.mxu0 0.0
    %216 = vmatpush1.msra.mxu0 0.0
    %217 = vmatprep.subr.mxu0 0.0
    %218 = vmatpush1.msra.mxu0 0.0
    %219 = vmatprep.subr.mxu0 0.0
    %220 = vmatpush1.msra.mxu0 0.0
    %221 = vmatprep.subr.mxu0 0.0
    %222 = vmatpush1.msra.mxu0 0.0
    %223 = vmatprep.subr.mxu0 0.0
    %224 = vmatpush1.msra.mxu0 0.0
    %225 = vmatprep.subr.mxu0 0.0
    %226 = vmatpush1.msra.mxu0 0.0
    %227 = vmatprep.subr.mxu0 0.0
    %228 = vmatpush1.msra.mxu0 %v191
    %229 = vmatprep.subr.mxu0 0.0
    %230 = vmatpush1.msra.mxu0 %v190
    %231 = vmatprep.subr.mxu0 0.0
    %232 = vmatpush1.msra.mxu0 %v189
    %233 = vmatprep.subr.mxu0 0.0
    %234 = vmatpush1.msra.mxu0 %v188
    %235 = vmatprep.subr.mxu0 0.0
    %236 = vmatpush2.msra.mxu0 0.0
    %237 = vmatprep.subr.mxu0 0.0
    %238 = vmatpush2.msra.mxu0 0.0
    %239 = vmatprep.subr.mxu0 0.0
    %240 = vmatpush2.msra.mxu0 0.0
    %241 = vmatprep.subr.mxu0 0.0
    %242 = vmatpush2.msra.mxu0 0.0
    %243 = vmatprep.subr.mxu0 0.0
    %244 = vmatpush2.msra.mxu0 0.0
    %245 = vmatprep.subr.mxu0 0.0
    %246 = vmatpush2.msra.mxu0 0.0
    %247 = vmatprep.subr.mxu0 0.0
    %248 = vmatpush2.msra.mxu0 0.0
    %249 = vmatprep.subr.mxu0 0.0
    %250 = vmatpush2.msra.mxu0 0.0
    %251 = vmatprep.subr.mxu0 0.0
    %252 = vmatpush2.msra.mxu0 0.0
    %253 = vmatprep.subr.mxu0 0.0
    %254 = vmatpush2.msra.mxu0 0.0
    %255 = vmatprep.subr.mxu0 0.0
    %256 = vmatpush2.msra.mxu0 0.0
    %257 = vmatprep.subr.mxu0 0.0
    %258 = vmatpush2.msra.mxu0 0.0
    %259 = vmatprep.subr.mxu0 0.0
    %260 = vmatpush2.msra.mxu0 0.0
    %261 = vmatprep.subr.mxu0 0.0
    %262 = vmatpush2.msra.mxu0 0.0
    %263 = vmatprep.subr.mxu0 0.0
    %264 = vmatpush2.msra.mxu0 0.0
    %265 = vmatprep.subr.mxu0 0.0
    %266 = vmatpush2.msra.mxu0 0.0
    %267 = vmatprep.mubr.f32.mxu0 0.0
    %268 = vmatmul.mubr.f32.gmra.mxu0 %v201
    %v269 = vpop.f32.mrf.mxu0
    %v270 = vadd.f32 %v197, %v269
    %v271 = vpop.f32.mrf.mxu0
    %272 = vdwg.mxu0
    %273 = vst [vmem:[%s5] sm:$0xff] %v270
    // Predicated region
    $region26: #{_forward_prepared.1} parent=1 // pred_check
      _
    $region27: #{_forward_prepared.1} parent=1 // pred_check_branch
      %275 = sbr.rel (0) target = $region29
    $region28: #{_forward_prepared.1} parent=1 // pred_region
      _
    $region29: #{_forward_prepared.1} parent=1 // pred_fallthru
      _
    // Predicated region
    $region30: #{_forward_prepared.1} parent=1 // pred_check
      _
    $region31: #{_forward_prepared.1} parent=1 // pred_check_branch
      %277 = sbr.rel (0) target = $region33
    $region32: #{_forward_prepared.1} parent=1 // pred_region
      _
    $region33: #{_forward_prepared.1} parent=1 // pred_fallthru
      _
    %278 = vsyncpa [#allocation3], 1

</llo_original>
